<compile_context>
chip_gen: v5e
topology: v5e:2x2
jax: 0.10.0
libtpu: 0.0.40
codegen_flags: <defaults>
</compile_context>

<pallas_src>
import functools
import math
import re

import jax
import jax.numpy as jnp
from jax.experimental import pallas as pl
from jax.experimental.pallas import tpu as pltpu


# ----------------------------- activation ----------------------------------


def _erf_f32(x):
    # Abramowitz & Stegun 7.1.26, max abs error ~1.5e-7 (plenty for f32 gelu).
    a1 = 0.254829592
    a2 = -0.284496736
    a3 = 1.421413741
    a4 = -1.453152027
    a5 = 1.061405429
    p = 0.3275911
    sign = jnp.where(x >= 0.0, 1.0, -1.0)
    z = jnp.abs(x)
    d = 1.0 + p * z
    # EUP approximate reciprocal + one Newton step (replaces the VALU divide).
    r = pl.reciprocal(d, approx=True)
    t = r * (2.0 - d * r)
    poly = ((((a5 * t + a4) * t + a3) * t + a2) * t + a1) * t
    return sign * (1.0 - poly * jnp.exp(-z * z))


def _apply_activation(y, act):
    if act == "relu":
        return jnp.maximum(y, 0.0)
    if act == "leaky_relu":
        # Module spec: F.leaky_relu(x, negative_slope=0.2)
        return jnp.where(y >= 0.0, y, 0.2 * y)
    if act == "gelu":
        # 0.5 * x * (1 + erf(x / sqrt(2)))  -- exact-erf gelu, as in the spec.
        return 0.5 * y * (1.0 + _erf_f32(y * (1.0 / math.sqrt(2.0))))
    raise ValueError(f"unsupported activation: {act}")


# ------------------------------- kernel -------------------------------------


def _intermediate_kernel(x_ref, w_ref, b_ref, o_ref, acc0_ref, acc1_ref, *, act):
    # x_ref: (tm, tk), w_ref: (tn, tk)  [nn.Linear (out,in) layout, NOT transposed],
    # b_ref: (1, tn), o_ref: (tm, tn), acc{0,1}_ref: (tm, tn) f32 scratch.
    i = pl.program_id(0)
    j = pl.program_id(1)
    k = pl.program_id(2)
    nk = pl.num_programs(2)
    # Output tiles are visited in (i, j) order with k fastest; consecutive
    # output tiles alternate accumulators so this tile's epilogue and the next
    # tile's first dot never share a scratch buffer (no WAR serialization).
    slot = (i * pl.num_programs(1) + j) % 2

    # Contract the last dim of both operands: (tm,tk) x (tn,tk) -> (tm,tn).
    # This is the x @ w.T pattern the MXU handles without an HBM transpose.
    part = jax.lax.dot_general(
        x_ref[...],
        w_ref[...],
        dimension_numbers=(((1,), (1,)), ((), ())),
        preferred_element_type=jnp.float32,
    )

    def run(acc_ref):
        @pl.when(k == 0)
        def _():
            acc_ref[...] = part          # direct assign: skip zero-init RMW

        @pl.when(k != 0)
        def _():
            acc_ref[...] += part

        @pl.when(k == nk - 1)
        def _():
            y = acc_ref[...] + b_ref[...].astype(jnp.float32)
            o_ref[...] = _apply_activation(y, act).astype(o_ref.dtype)

    @pl.when(slot == 0)
    def _():
        run(acc0_ref)

    @pl.when(slot == 1)
    def _():
        run(acc1_ref)


# --------------------------- config / tiling ---------------------------------


def _cdiv(a, b):
    return -(-a // b)


def _round_up(a, m):
    return _cdiv(a, m) * m


def _tpu_generation():
    try:
        kind = jax.devices()[0].device_kind.lower()
    except Exception:
        return None
    m = re.search(r"v(\d+)", kind)
    return int(m.group(1)) if m else None


def _vmem_capacity_bytes(gen):
    try:
        cap = int(pltpu.get_tpu_info().vmem_capacity_bytes)
        if cap > 0:
            return cap
    except Exception:
        pass
    if gen == 7:
        return 64 << 20
    if gen in (5, 6):
        return 128 << 20
    return 64 << 20  # conservative default


def _choose_k_tile(K, tk_max):
    """Returns (tk, K_padded). tk always divides K_padded exactly."""
    if K <= tk_max:
        return K, K                      # full-dim block (always legal)
    Kp = _round_up(K, 128)
    for t in (1024, 512, 256, 128):
        if t <= tk_max and Kp % t == 0:
            return t, Kp
    return 128, Kp                       # unreachable (128 | Kp) but safe


def _footprint_bytes(tm, tn, tk, xb, wb, ob):
    # Double-buffered inputs/outputs + two f32 accumulator scratch tiles.
    dbl = 2 * (tm * tk * xb + tn * tk * wb + tn * wb + tm * tn * ob)
    return dbl + 2 * tm * tn * 4


# ------------------------------- wrapper -------------------------------------


def intermediate_forward(x, weight, bias, *, activation="gelu"):
    """Pallas TPU implementation of Intermediate.forward.

    Args:
      x:      (B, L, D)
      weight: (I, D)   -- PyTorch nn.Linear layout (out_features, in_features)
      bias:   (I,)
    Returns:
      activation(x @ weight.T + bias), shape (B, L, I), dtype of x.
    """
    B, L, D = x.shape
    N, D_w = weight.shape
    assert D == D_w, (D, D_w)
    M, K = B * L, D

    gen = _tpu_generation()
    vmem_cap = _vmem_capacity_bytes(gen)

    # Generation-specific target tiles (see header comment).
    if gen == 5:
        tm_t, tn_t, tk_t = 512, 512, 1024
        budget = int(vmem_cap * 0.80)
    elif gen == 7:
        tm_t, tn_t, tk_t = 1024, 1024, 512
        budget = min(int(vmem_cap * 0.80), 56 << 20)
    elif gen == 6:
        tm_t, tn_t, tk_t = 1024, 1024, 1024
        budget = int(vmem_cap * 0.80)
    else:
        tm_t, tn_t, tk_t = 512, 512, 512
        budget = min(int(vmem_cap * 0.80), 48 << 20)

    tm = M if M <= tm_t else tm_t
    tn = N if N <= tn_t else tn_t
    tk, Kp = _choose_k_tile(K, tk_t)

    # v7x has 2 TensorCores: make sure at least one parallel axis has >=2 tiles.
    if gen == 7 and _cdiv(M, tm) * _cdiv(N, tn) < 2:
        if tn % 256 == 0:
            tn //= 2
        elif tm % 256 == 0:
            tm //= 2

    xb = x.dtype.itemsize
    wb = weight.dtype.itemsize
    ob = x.dtype.itemsize

    # Shrink tiles (K first -- free in HBM traffic) until the footprint fits.
    while _footprint_bytes(tm, tn, tk, xb, wb, ob) > budget:
        if tk % 256 == 0:
            tk //= 2          # still divides Kp, still a 128-multiple
        elif tn % 256 == 0:
            tn //= 2
        elif tm % 256 == 0:
            tm //= 2
        else:
            break             # small full-dim tiles; footprint is tiny anyway

    x2 = x.reshape(M, K)
    w = weight                       # (N, K): no HBM transpose
    b2 = bias.reshape(1, N)
    if Kp != K:                      # zero-pad K so tk divides it exactly
        x2 = jnp.pad(x2, ((0, 0), (0, Kp - K)))
        w = jnp.pad(w, ((0, 0), (0, Kp - K)))

    grid = (_cdiv(M, tm), _cdiv(N, tn), Kp // tk)

    need = _footprint_bytes(tm, tn, tk, xb, wb, ob) + (6 << 20)
    vmem_limit = int(min(max(need, 32 << 20), vmem_cap - (4 << 20)))

    cost = pl.CostEstimate(
        flops=2 * M * N * Kp,
        transcendentals=(M * N if activation == "gelu" else 0),
        bytes_accessed=(
            M * Kp * xb + N * Kp * wb + N * bias.dtype.itemsize + M * N * ob
        ),
    )

    out = pl.pallas_call(
        functools.partial(_intermediate_kernel, act=activation),
        out_shape=jax.ShapeDtypeStruct((M, N), x.dtype),
        grid_spec=pltpu.PrefetchScalarGridSpec(
            num_scalar_prefetch=0,
            grid=grid,
            in_specs=[
                pl.BlockSpec((tm, tk), lambda i, j, k: (i, k)),   # x
                pl.BlockSpec((tn, tk), lambda i, j, k: (j, k)),   # weight (I, D)
                pl.BlockSpec((1, tn), lambda i, j, k: (0, j)),    # bias
            ],
            out_specs=pl.BlockSpec((tm, tn), lambda i, j, k: (i, j)),
            scratch_shapes=[
                pltpu.VMEM((tm, tn), jnp.float32),   # acc slot 0
                pltpu.VMEM((tm, tn), jnp.float32),   # acc slot 1
            ],
        ),
        compiler_params=pltpu.CompilerParams(
            dimension_semantics=("parallel", "parallel", "arbitrary"),
            vmem_limit_bytes=vmem_limit,
        ),
        cost_estimate=cost,
    )(x2, w, b2)
    return out.reshape(B, L, N)


# ------------------------------ reference ------------------------------------


def _reference(x, weight, bias, activation="gelu"):
    y = (
        jnp.einsum(
            "bld,id->bli", x.astype(jnp.float32), weight.astype(jnp.float32)
        )
        + bias.astype(jnp.float32)
    )
    if activation == "relu":
        return jnp.maximum(y, 0.0)
    if activation == "leaky_relu":
        return jnp.where(y >= 0.0, y, 0.2 * y)
    return 0.5 * y * (1.0 + jax.lax.erf(y / jnp.sqrt(2.0).astype(jnp.float32)))


if __name__ == "__main__":
    # Small shapes consistent with the module: (B, L, D) -> (B, L, I)
    B, L, D, I = 2, 8, 32, 64
    key = jax.random.PRNGKey(0)
    kx, kw, kb = jax.random.split(key, 3)

    x = jax.random.normal(kx, (B, L, D), dtype=jnp.float32)
    # nn.Linear default init: U(-1/sqrt(D), 1/sqrt(D))
    bound = 1.0 / math.sqrt(D)
    weight = jax.random.uniform(
        kw, (I, D), minval=-bound, maxval=bound, dtype=jnp.float32
    )
    bias = jax.random.uniform(
        kb, (I,), minval=-bound, maxval=bound, dtype=jnp.float32
    )

    ok = True
    for act in ("gelu", "relu", "leaky_relu"):
        out = intermediate_forward(x, weight, bias, activation=act)
        out = jax.block_until_ready(out)
        ref = _reference(x, weight, bias, activation=act)
        assert out.shape == (B, L, I)
        err = float(jnp.max(jnp.abs(out - ref.astype(out.dtype))))
        ok = ok and bool(
            jnp.allclose(out, ref.astype(out.dtype), atol=1e-4, rtol=1e-4)
        )
        assert ok, (act, err)

    print("KERNEL_OK")
</pallas_src>

<mosaic_0001>
module attributes {stable_mosaic.version = 11 : i64} {
  func.func @_intermediate_kernel(%arg0: i32, %arg1: i32, %arg2: i32, %arg3: memref<16x32xf32, #tpu.memory_space<vmem>>, %arg4: memref<64x32xf32, #tpu.memory_space<vmem>>, %arg5: memref<1x64xf32, #tpu.memory_space<vmem>>, %arg6: memref<16x64xf32, #tpu.memory_space<vmem>>, %arg7: memref<16x64xf32, #tpu.memory_space<vmem>>, %arg8: memref<16x64xf32, #tpu.memory_space<vmem>>) attributes {dimension_semantics = [#tpu.dimension_semantics<parallel>, #tpu.dimension_semantics<parallel>, #tpu.dimension_semantics<arbitrary>], iteration_bounds = array<i64: 1, 1, 1>, scalar_prefetch = 0 : i64, scratch_operands = 2 : i64, tpu.core_type = #tpu.core_type<tc>, window_params = [{transform_indices = @transform_0, window_bounds = array<i64: 16, 32>}, {transform_indices = @transform_1, window_bounds = array<i64: 64, 32>}, {transform_indices = @transform_2, window_bounds = array<i64: 1, 64>}, {transform_indices = @transform_3, window_bounds = array<i64: 16, 64>}]} {
    %c1_i32 = arith.constant 1 : i32
    %0 = arith.muli %arg0, %c1_i32 : i32
    %1 = arith.addi %0, %arg1 : i32
    %c2_i32 = arith.constant 2 : i32
    %c0_i32 = arith.constant 0 : i32
    %2 = arith.cmpi eq, %c2_i32, %c0_i32 : i32
    %c1_i32_0 = arith.constant 1 : i32
    %3 = arith.select %2, %c1_i32_0, %c2_i32 : i32
    %4 = arith.remsi %1, %3 : i32
    %c0_i32_1 = arith.constant 0 : i32
    %5 = arith.cmpi ne, %4, %c0_i32_1 : i32
    %c0_i32_2 = arith.constant 0 : i32
    %6 = arith.cmpi slt, %4, %c0_i32_2 : i32
    %c0_i32_3 = arith.constant 0 : i32
    %7 = arith.cmpi slt, %3, %c0_i32_3 : i32
    %8 = arith.xori %6, %7 : i1
    %9 = arith.andi %8, %5 : i1
    %10 = arith.addi %4, %3 : i32
    %11 = arith.select %9, %10, %4 : i32
    %c0 = arith.constant 0 : index
    %c0_4 = arith.constant 0 : index
    %12 = vector.load %arg3[%c0, %c0_4] : memref<16x32xf32, #tpu.memory_space<vmem>>, vector<16x32xf32>
    %c0_5 = arith.constant 0 : index
    %c0_6 = arith.constant 0 : index
    %13 = vector.load %arg4[%c0_5, %c0_6] : memref<64x32xf32, #tpu.memory_space<vmem>>, vector<64x32xf32>
    %cst = arith.constant dense<0.000000e+00> : vector<16x64xf32>
    %14 = tpu.matmul %12, %13, %cst {dimension_numbers = #tpu.dot_dimension_numbers<[1], [1], [0], [0], [0, 0, 1, 0], [], []>} : vector<16x32xf32>, vector<64x32xf32>, vector<16x64xf32> -> vector<16x64xf32>
    %c0_i32_7 = arith.constant 0 : i32
    %15 = arith.cmpi eq, %11, %c0_i32_7 : i32
    %16 = arith.extui %15 : i1 to i32
    %c0_i32_8 = arith.constant 0 : i32
    %17 = arith.cmpi ne, %16, %c0_i32_8 : i32
    scf.if %17 {
      %c0_i32_11 = arith.constant 0 : i32
      %21 = arith.cmpi eq, %arg2, %c0_i32_11 : i32
      %22 = arith.extui %21 : i1 to i32
      %c0_i32_12 = arith.constant 0 : i32
      %23 = arith.cmpi ne, %22, %c0_i32_12 : i32
      scf.if %23 {
        %c0_17 = arith.constant 0 : index
        %c0_18 = arith.constant 0 : index
        %30 = vector.load %arg7[%c0_17, %c0_18] : memref<16x64xf32, #tpu.memory_space<vmem>>, vector<16x64xf32>
        tpu.vector_store %arg7[%c0_17, %c0_18], %14 {strides = array<i32>} : memref<16x64xf32, #tpu.memory_space<vmem>>, vector<16x64xf32>,
      } else {
      }
      %c0_i32_13 = arith.constant 0 : i32
      %24 = arith.cmpi ne, %arg2, %c0_i32_13 : i32
      %25 = arith.extui %24 : i1 to i32
      %c0_i32_14 = arith.constant 0 : i32
      %26 = arith.cmpi ne, %25, %c0_i32_14 : i32
      scf.if %26 {
        %c0_17 = arith.constant 0 : index
        %c0_18 = arith.constant 0 : index
        %30 = vector.load %arg7[%c0_17, %c0_18] : memref<16x64xf32, #tpu.memory_space<vmem>>, vector<16x64xf32>
        %31 = arith.addf %30, %14 : vector<16x64xf32>
        %c0_19 = arith.constant 0 : index
        %c0_20 = arith.constant 0 : index
        %32 = vector.load %arg7[%c0_19, %c0_20] : memref<16x64xf32, #tpu.memory_space<vmem>>, vector<16x64xf32>
        tpu.vector_store %arg7[%c0_19, %c0_20], %31 {strides = array<i32>} : memref<16x64xf32, #tpu.memory_space<vmem>>, vector<16x64xf32>,
      } else {
      }
      %c0_i32_15 = arith.constant 0 : i32
      %27 = arith.cmpi eq, %arg2, %c0_i32_15 : i32
      %28 = arith.extui %27 : i1 to i32
      %c0_i32_16 = arith.constant 0 : i32
      %29 = arith.cmpi ne, %28, %c0_i32_16 : i32
      scf.if %29 {
        %c0_17 = arith.constant 0 : index
        %c0_18 = arith.constant 0 : index
        %30 = vector.load %arg7[%c0_17, %c0_18] : memref<16x64xf32, #tpu.memory_space<vmem>>, vector<16x64xf32>
        %c0_19 = arith.constant 0 : index
        %c0_20 = arith.constant 0 : index
        %31 = vector.load %arg5[%c0_19, %c0_20] : memref<1x64xf32, #tpu.memory_space<vmem>>, vector<1x64xf32>
        %32 = vector.broadcast %31 : vector<1x64xf32> to vector<16x64xf32>
        %33 = arith.addf %30, %32 : vector<16x64xf32>
        %cst_21 = arith.constant 5.000000e-01 : f32
        %34 = vector.broadcast %cst_21 : f32 to vector<16x64xf32>
        %35 = arith.mulf %34, %33 : vector<16x64xf32>
        %cst_22 = arith.constant 0.707106769 : f32
        %36 = vector.broadcast %cst_22 : f32 to vector<16x64xf32>
        %37 = arith.mulf %33, %36 : vector<16x64xf32>
        %cst_23 = arith.constant 0.000000e+00 : f32
        %38 = vector.broadcast %cst_23 : f32 to vector<16x64xf32>
        %39 = arith.cmpf oge, %37, %38 : vector<16x64xf32>
        %cst_24 = arith.constant 1.000000e+00 : f32
        %cst_25 = arith.constant -1.000000e+00 : f32
        %40 = vector.broadcast %cst_24 : f32 to vector<16x64xf32>
        %41 = vector.broadcast %cst_25 : f32 to vector<16x64xf32>
        %42 = arith.select %39, %40, %41 : vector<16x64xi1>, vector<16x64xf32>
        %43 = math.absf %37 : vector<16x64xf32>
        %cst_26 = arith.constant 0.327591091 : f32
        %44 = vector.broadcast %cst_26 : f32 to vector<16x64xf32>
        %45 = arith.mulf %44, %43 : vector<16x64xf32>
        %cst_27 = arith.constant 1.000000e+00 : f32
        %46 = vector.broadcast %cst_27 : f32 to vector<16x64xf32>
        %47 = arith.addf %46, %45 : vector<16x64xf32>
        %48 = tpu.reciprocal %47 {approx = true} : vector<16x64xf32> -> vector<16x64xf32>
        %49 = arith.mulf %47, %48 : vector<16x64xf32>
        %cst_28 = arith.constant 2.000000e+00 : f32
        %50 = vector.broadcast %cst_28 : f32 to vector<16x64xf32>
        %51 = arith.subf %50, %49 : vector<16x64xf32>
        %52 = arith.mulf %48, %51 : vector<16x64xf32>
        %cst_29 = arith.constant 1.06140542 : f32
        %53 = vector.broadcast %cst_29 : f32 to vector<16x64xf32>
        %54 = arith.mulf %53, %52 : vector<16x64xf32>
        %cst_30 = arith.constant -1.45315206 : f32
        %55 = vector.broadcast %cst_30 : f32 to vector<16x64xf32>
        %56 = arith.addf %54, %55 : vector<16x64xf32>
        %57 = arith.mulf %56, %52 : vector<16x64xf32>
        %cst_31 = arith.constant 1.42141378 : f32
        %58 = vector.broadcast %cst_31 : f32 to vector<16x64xf32>
        %59 = arith.addf %57, %58 : vector<16x64xf32>
        %60 = arith.mulf %59, %52 : vector<16x64xf32>
        %cst_32 = arith.constant -0.284496725 : f32
        %61 = vector.broadcast %cst_32 : f32 to vector<16x64xf32>
        %62 = arith.addf %60, %61 : vector<16x64xf32>
        %63 = arith.mulf %62, %52 : vector<16x64xf32>
        %cst_33 = arith.constant 0.254829586 : f32
        %64 = vector.broadcast %cst_33 : f32 to vector<16x64xf32>
        %65 = arith.addf %63, %64 : vector<16x64xf32>
        %66 = arith.mulf %65, %52 : vector<16x64xf32>
        %cst_34 = arith.constant 0.000000e+00 : f32
        %67 = vector.broadcast %cst_34 : f32 to vector<16x64xf32>
        %68 = arith.subf %67, %43 : vector<16x64xf32>
        %69 = arith.mulf %68, %43 : vector<16x64xf32>
        %70 = math.exp %69 : vector<16x64xf32>
        %71 = arith.mulf %66, %70 : vector<16x64xf32>
        %cst_35 = arith.constant 1.000000e+00 : f32
        %72 = vector.broadcast %cst_35 : f32 to vector<16x64xf32>
        %73 = arith.subf %72, %71 : vector<16x64xf32>
        %74 = arith.mulf %42, %73 : vector<16x64xf32>
        %cst_36 = arith.constant 1.000000e+00 : f32
        %75 = vector.broadcast %cst_36 : f32 to vector<16x64xf32>
        %76 = arith.addf %75, %74 : vector<16x64xf32>
        %77 = arith.mulf %35, %76 : vector<16x64xf32>
        %c0_37 = arith.constant 0 : index
        %c0_38 = arith.constant 0 : index
        %78 = vector.load %arg6[%c0_37, %c0_38] : memref<16x64xf32, #tpu.memory_space<vmem>>, vector<16x64xf32>
        tpu.vector_store %arg6[%c0_37, %c0_38], %77 {strides = array<i32>} : memref<16x64xf32, #tpu.memory_space<vmem>>, vector<16x64xf32>,
      } else {
      }
    } else {
    }
    %c1_i32_9 = arith.constant 1 : i32
    %18 = arith.cmpi eq, %11, %c1_i32_9 : i32
    %19 = arith.extui %18 : i1 to i32
    %c0_i32_10 = arith.constant 0 : i32
    %20 = arith.cmpi ne, %19, %c0_i32_10 : i32
    scf.if %20 {
      %c0_i32_11 = arith.constant 0 : i32
      %21 = arith.cmpi eq, %arg2, %c0_i32_11 : i32
      %22 = arith.extui %21 : i1 to i32
      %c0_i32_12 = arith.constant 0 : i32
      %23 = arith.cmpi ne, %22, %c0_i32_12 : i32
      scf.if %23 {
        %c0_17 = arith.constant 0 : index
        %c0_18 = arith.constant 0 : index
        %30 = vector.load %arg8[%c0_17, %c0_18] : memref<16x64xf32, #tpu.memory_space<vmem>>, vector<16x64xf32>
        tpu.vector_store %arg8[%c0_17, %c0_18], %14 {strides = array<i32>} : memref<16x64xf32, #tpu.memory_space<vmem>>, vector<16x64xf32>,
      } else {
      }
      %c0_i32_13 = arith.constant 0 : i32
      %24 = arith.cmpi ne, %arg2, %c0_i32_13 : i32
      %25 = arith.extui %24 : i1 to i32
      %c0_i32_14 = arith.constant 0 : i32
      %26 = arith.cmpi ne, %25, %c0_i32_14 : i32
      scf.if %26 {
        %c0_17 = arith.constant 0 : index
        %c0_18 = arith.constant 0 : index
        %30 = vector.load %arg8[%c0_17, %c0_18] : memref<16x64xf32, #tpu.memory_space<vmem>>, vector<16x64xf32>
        %31 = arith.addf %30, %14 : vector<16x64xf32>
        %c0_19 = arith.constant 0 : index
        %c0_20 = arith.constant 0 : index
        %32 = vector.load %arg8[%c0_19, %c0_20] : memref<16x64xf32, #tpu.memory_space<vmem>>, vector<16x64xf32>
        tpu.vector_store %arg8[%c0_19, %c0_20], %31 {strides = array<i32>} : memref<16x64xf32, #tpu.memory_space<vmem>>, vector<16x64xf32>,
      } else {
      }
      %c0_i32_15 = arith.constant 0 : i32
      %27 = arith.cmpi eq, %arg2, %c0_i32_15 : i32
      %28 = arith.extui %27 : i1 to i32
      %c0_i32_16 = arith.constant 0 : i32
      %29 = arith.cmpi ne, %28, %c0_i32_16 : i32
      scf.if %29 {
        %c0_17 = arith.constant 0 : index
        %c0_18 = arith.constant 0 : index
        %30 = vector.load %arg8[%c0_17, %c0_18] : memref<16x64xf32, #tpu.memory_space<vmem>>, vector<16x64xf32>
        %c0_19 = arith.constant 0 : index
        %c0_20 = arith.constant 0 : index
        %31 = vector.load %arg5[%c0_19, %c0_20] : memref<1x64xf32, #tpu.memory_space<vmem>>, vector<1x64xf32>
        %32 = vector.broadcast %31 : vector<1x64xf32> to vector<16x64xf32>
        %33 = arith.addf %30, %32 : vector<16x64xf32>
        %cst_21 = arith.constant 5.000000e-01 : f32
        %34 = vector.broadcast %cst_21 : f32 to vector<16x64xf32>
        %35 = arith.mulf %34, %33 : vector<16x64xf32>
        %cst_22 = arith.constant 0.707106769 : f32
        %36 = vector.broadcast %cst_22 : f32 to vector<16x64xf32>
        %37 = arith.mulf %33, %36 : vector<16x64xf32>
        %cst_23 = arith.constant 0.000000e+00 : f32
        %38 = vector.broadcast %cst_23 : f32 to vector<16x64xf32>
        %39 = arith.cmpf oge, %37, %38 : vector<16x64xf32>
        %cst_24 = arith.constant 1.000000e+00 : f32
        %cst_25 = arith.constant -1.000000e+00 : f32
        %40 = vector.broadcast %cst_24 : f32 to vector<16x64xf32>
        %41 = vector.broadcast %cst_25 : f32 to vector<16x64xf32>
        %42 = arith.select %39, %40, %41 : vector<16x64xi1>, vector<16x64xf32>
        %43 = math.absf %37 : vector<16x64xf32>
        %cst_26 = arith.constant 0.327591091 : f32
        %44 = vector.broadcast %cst_26 : f32 to vector<16x64xf32>
        %45 = arith.mulf %44, %43 : vector<16x64xf32>
        %cst_27 = arith.constant 1.000000e+00 : f32
        %46 = vector.broadcast %cst_27 : f32 to vector<16x64xf32>
        %47 = arith.addf %46, %45 : vector<16x64xf32>
        %48 = tpu.reciprocal %47 {approx = true} : vector<16x64xf32> -> vector<16x64xf32>
        %49 = arith.mulf %47, %48 : vector<16x64xf32>
        %cst_28 = arith.constant 2.000000e+00 : f32
        %50 = vector.broadcast %cst_28 : f32 to vector<16x64xf32>
        %51 = arith.subf %50, %49 : vector<16x64xf32>
        %52 = arith.mulf %48, %51 : vector<16x64xf32>
        %cst_29 = arith.constant 1.06140542 : f32
        %53 = vector.broadcast %cst_29 : f32 to vector<16x64xf32>
        %54 = arith.mulf %53, %52 : vector<16x64xf32>
        %cst_30 = arith.constant -1.45315206 : f32
        %55 = vector.broadcast %cst_30 : f32 to vector<16x64xf32>
        %56 = arith.addf %54, %55 : vector<16x64xf32>
        %57 = arith.mulf %56, %52 : vector<16x64xf32>
        %cst_31 = arith.constant 1.42141378 : f32
        %58 = vector.broadcast %cst_31 : f32 to vector<16x64xf32>
        %59 = arith.addf %57, %58 : vector<16x64xf32>
        %60 = arith.mulf %59, %52 : vector<16x64xf32>
        %cst_32 = arith.constant -0.284496725 : f32
        %61 = vector.broadcast %cst_32 : f32 to vector<16x64xf32>
        %62 = arith.addf %60, %61 : vector<16x64xf32>
        %63 = arith.mulf %62, %52 : vector<16x64xf32>
        %cst_33 = arith.constant 0.254829586 : f32
        %64 = vector.broadcast %cst_33 : f32 to vector<16x64xf32>
        %65 = arith.addf %63, %64 : vector<16x64xf32>
        %66 = arith.mulf %65, %52 : vector<16x64xf32>
        %cst_34 = arith.constant 0.000000e+00 : f32
        %67 = vector.broadcast %cst_34 : f32 to vector<16x64xf32>
        %68 = arith.subf %67, %43 : vector<16x64xf32>
        %69 = arith.mulf %68, %43 : vector<16x64xf32>
        %70 = math.exp %69 : vector<16x64xf32>
        %71 = arith.mulf %66, %70 : vector<16x64xf32>
        %cst_35 = arith.constant 1.000000e+00 : f32
        %72 = vector.broadcast %cst_35 : f32 to vector<16x64xf32>
        %73 = arith.subf %72, %71 : vector<16x64xf32>
        %74 = arith.mulf %42, %73 : vector<16x64xf32>
        %cst_36 = arith.constant 1.000000e+00 : f32
        %75 = vector.broadcast %cst_36 : f32 to vector<16x64xf32>
        %76 = arith.addf %75, %74 : vector<16x64xf32>
        %77 = arith.mulf %35, %76 : vector<16x64xf32>
        %c0_37 = arith.constant 0 : index
        %c0_38 = arith.constant 0 : index
        %78 = vector.load %arg6[%c0_37, %c0_38] : memref<16x64xf32, #tpu.memory_space<vmem>>, vector<16x64xf32>
        tpu.vector_store %arg6[%c0_37, %c0_38], %77 {strides = array<i32>} : memref<16x64xf32, #tpu.memory_space<vmem>>, vector<16x64xf32>,
      } else {
      }
    } else {
    }
    return
  }
  func.func @transform_0(%arg0: i32, %arg1: i32, %arg2: i32) -> (i32, i32) {
    %c0_i32 = arith.constant 0 : i32
    return %arg0, %arg2 : i32, i32
  }
  func.func @transform_1(%arg0: i32, %arg1: i32, %arg2: i32) -> (i32, i32) {
    %c0_i32 = arith.constant 0 : i32
    return %arg1, %arg2 : i32, i32
  }
  func.func @transform_2(%arg0: i32, %arg1: i32, %arg2: i32) -> (i32, i32) {
    %c0_i32 = arith.constant 0 : i32
    %c0_i32_0 = arith.constant 0 : i32
    return %c0_i32, %arg1 : i32, i32
  }
  func.func @transform_3(%arg0: i32, %arg1: i32, %arg2: i32) -> (i32, i32) {
    %c0_i32 = arith.constant 0 : i32
    return %arg0, %arg1 : i32, i32
  }
}

</mosaic_0001>

<llo_original>
// kernel: tpu_custom_call.1
$region0: #{tpu_custom_call.1}
  #allocation0 [shape = 'u32[]', space=smem, size = 0x4, offset = 0x4, fixed_abs, tag = 'smem constant byte address 0x4 - core index']
  #allocation1 [shape = 'u32[72,128]{1,0:T(1,128)}', space=vmem, size = 0x9000, scoped, tag = 'internal scratch']
  #allocation2 [shape = 'f32[16,64]{1,0:T(8,128)}', space=vmem, size = 0x2000, scoped, tag = 'scratch operand']
  #allocation3 [shape = 'f32[16,64]{1,0:T(8,128)}', space=vmem, size = 0x2000, scoped, tag = 'scratch operand']
  %s0 = inlined_call_operand.vmem [shape: f32[16,32], index: 0, kind: input, shape index: {}]
  %s1 = inlined_call_operand.vmem [shape: f32[64,32], index: 1, kind: input, shape index: {}]
  %s2 = inlined_call_operand.vmem [shape: f32[1,64], index: 2, kind: input, shape index: {}]
  %s3 = inlined_call_operand.hbm [shape: f32[16,64], index: 3, kind: output, shape index: {}]
  %s4 = sld [smem:[#allocation0]]
  $region54: #{tpu_custom_call.1} parent=0
    _
  %s6 = ssub.s32 1, %s4
  %s7 = scalar_select 0, %s6, %s4
  $region1: #{tpu_custom_call.1} parent=0
    #allocation4 [shape = 'u8[8192]{0}', space=vmem, size = 0x2000, scoped, tag = 'output window, operand 0, single buffered']
    #allocation5 [shape = 's32[1]{0}', space=sflag, size = 0x4, scoped, tag = 'scoped memory for tpu_custom_call.1']
    %8 = vsyncpa [#allocation5], 0
    // Predicated region
    $region2: #{tpu_custom_call.1} parent=1 // pred_check
      _
    $region3: #{tpu_custom_call.1} parent=1 // pred_check_branch
      %10 = sbr.rel (0) target = $region5
    $region4: #{tpu_custom_call.1} parent=1 // pred_region
      _
    $region5: #{tpu_custom_call.1} parent=1 // pred_fallthru
      _
    // Predicated region
    $region6: #{tpu_custom_call.1} parent=1 // pred_check
      _
    $region7: #{tpu_custom_call.1} parent=1 // pred_check_branch
      %12 = sbr.rel (0) target = $region9
    $region8: #{tpu_custom_call.1} parent=1 // pred_region
      _
    $region9: #{tpu_custom_call.1} parent=1 // pred_fallthru
      _
    // Predicated region
    $region10: #{tpu_custom_call.1} parent=1 // pred_check
      _
    $region11: #{tpu_custom_call.1} parent=1 // pred_check_branch
      %14 = sbr.rel (0) target = $region13
    $region12: #{tpu_custom_call.1} parent=1 // pred_region
      _
    $region13: #{tpu_custom_call.1} parent=1 // pred_fallthru
      _
    %s15 = sadd.s32 0, 0
    %p16 = scmp.lt.s32.totalorder %s15, 0
    %s17 = ssub.s32 0, %s15
    %s18 = scalar_select %p16, %s17, %s15
    %s19 = sand.u32 %s18, 1
    %s20 = ssub.s32 0, %s19
    %s21 = scalar_select %p16, %s20, %s19
    %p22 = scmp.ne.s32.totalorder %s21, 0
    %p23 = scmp.lt.s32.totalorder %s21, 0
    %p24 = pnand %p23, %p22
    %p25 = pneg %p24
    %s26 = sadd.s32 %s21, 2
    %s27 = scalar_select %p25, %s26, %s21
    %v28 = vld [vmem:[%s0] sm:$0xff]
    %v29 = vld [vmem:[%s0 + $0x8] sm:$0xff]
    %v30 = vld [vmem:[%s1] sm:$0xff]
    %v31 = vld [vmem:[%s1 + $0x8] sm:$0xff]
    %v32 = vld [vmem:[%s1 + $0x10] sm:$0xff]
    %v33 = vld [vmem:[%s1 + $0x18] sm:$0xff]
    %v34 = vld [vmem:[%s1 + $0x20] sm:$0xff]
    %v35 = vld [vmem:[%s1 + $0x28] sm:$0xff]
    %v36 = vld [vmem:[%s1 + $0x30] sm:$0xff]
    %v37 = vld [vmem:[%s1 + $0x38] sm:$0xff]
    %vm38 = vcmask 261120
    %v40 = vsel %vm38, %v28, 0
    %v43 = vsel %vm38, %v29, 0
    %v46 = vsel %vm38, %v30, 0
    %v49 = vsel %vm38, %v31, 0
    %v52 = vsel %vm38, %v32, 0
    %v55 = vsel %vm38, %v33, 0
    %v58 = vsel %vm38, %v34, 0
    %v61 = vsel %vm38, %v35, 0
    %v64 = vsel %vm38, %v36, 0
    %v67 = vsel %vm38, %v37, 0
    %69 = vmatpush.xpose.msra.mxu0 0.0
    %70 = vmatpush.xpose.msra.mxu0 0.0
    %71 = vmatpush.xpose.msra.mxu0 0.0
    %72 = vmatpush.xpose.msra.mxu0 0.0
    %73 = vmatpush.xpose.msra.mxu0 0.0
    %74 = vmatpush.xpose.msra.mxu0 0.0
    %75 = vmatpush.xpose.msra.mxu0 0.0
    %76 = vmatpush.xpose.msra.mxu0 0.0
    %77 = vmatpush.xpose.msra.mxu0 %v67
    %78 = vmatpush.xpose.msra.mxu0 %v64
    %79 = vmatpush.xpose.msra.mxu0 %v61
    %80 = vmatpush.xpose.msra.mxu0 %v58
    %81 = vmatpush.xpose.msra.mxu0 %v55
    %82 = vmatpush.xpose.msra.mxu0 %v52
    %83 = vmatpush.xpose.msra.mxu0 %v49
    %84 = vmatpush.xpose.msra.mxu0 %v46
    %85 = vmatmul.f32.gmra.mxu0 %v40
    %v86 = vpop.f32.mrf.mxu0
    %v87 = vadd.f32 0.0, %v86
    %88 = vmatmul.f32.gmra.mxu0 %v43
    %v89 = vpop.f32.mrf.mxu0
    %v90 = vadd.f32 0.0, %v89
    %91 = vdwg.mxu0
    %p92 = scmp.eq.s32.totalorder %s27, 0
    // Predicated region
    $region14: #{tpu_custom_call.1} parent=1 // pred_check
      %p93 = pneg %p92
    $region15: #{tpu_custom_call.1} parent=1 // pred_check_branch
      %95 = sbr.rel (%p93) target = $region17
    $region16: #{tpu_custom_call.1} parent=1 // pred_region
      %p96 = scmp.eq.s32.totalorder 0, 0
      // Predicated region
      $region18: #{tpu_custom_call.1} parent=16 // pred_check
        %p97 = pneg %p96
      $region19: #{tpu_custom_call.1} parent=16 // pred_check_branch
        %99 = sbr.rel (%p97) target = $region21
      $region20: #{tpu_custom_call.1} parent=16 // pred_region
        %vm100 = vcmask 523264
        %101 = vst.msk [vmem:[#allocation2] sm:$0xff] %vm100, %v87
        %102 = vst.msk [vmem:[#allocation2 + $0x8] sm:$0xff] %vm100, %v90
      $region21: #{tpu_custom_call.1} parent=16 // pred_fallthru
        _
      %p103 = scmp.ne.s32.totalorder 0, 0
      // Predicated region
      $region22: #{tpu_custom_call.1} parent=16 // pred_check
        %p104 = pneg %p103
      $region23: #{tpu_custom_call.1} parent=16 // pred_check_branch
        %106 = sbr.rel (%p104) target = $region25
      $region24: #{tpu_custom_call.1} parent=16 // pred_region
        %v107 = vld [vmem:[#allocation2] sm:$0xff]
        %v108 = vld [vmem:[#allocation2 + $0x8] sm:$0xff]
        %v109 = vadd.f32 %v107, %v87
        %v110 = vadd.f32 %v108, %v90
        %vm111 = vcmask 523264
        %112 = vst.msk [vmem:[#allocation2] sm:$0xff] %vm111, %v109
        %113 = vst.msk [vmem:[#allocation2 + $0x8] sm:$0xff] %vm111, %v110
      $region25: #{tpu_custom_call.1} parent=16 // pred_fallthru
        _
      // Predicated region
      $region26: #{tpu_custom_call.1} parent=16 // pred_check
        %p114 = pneg %p96
      $region27: #{tpu_custom_call.1} parent=16 // pred_check_branch
        %116 = sbr.rel (%p114) target = $region29
      $region28: #{tpu_custom_call.1} parent=16 // pred_region
        %v117 = vld [vmem:[#allocation2] sm:$0xff]
        %v118 = vld [vmem:[#allocation2 + $0x8] sm:$0xff]
        %v119 = vld [vmem:[%s2] sm:$0x1]
        %v121 = vperm.slane %v119, 0
        %v123 = vadd.f32 %v117, %v121
        %v124 = vadd.f32 %v118, %v121
        %v125 = vmul.f32 %v123, 0.5
        %v126 = vmul.f32 %v124, 0.5
        %v127 = vmul.f32 %v123, 0.70710677
        %v128 = vmul.f32 %v124, 0.70710677
        %vm129 = vcmp.ge.f32.partialorder %v127, 0.0
        %vm130 = vcmp.ge.f32.partialorder %v128, 0.0
        %v131 = vsel %vm129, 1.0, -1.0
        %v132 = vsel %vm130, 1.0, -1.0
        %v133 = vand.u32 2147483647, %v127
        %v134 = vand.u32 2147483647, %v128
        %v135 = vmul.f32 %v133, 0.3275911
        %v136 = vmul.f32 %v134, 0.3275911
        %v137 = vadd.f32 %v135, 1.0
        %v138 = vadd.f32 %v136, 1.0
        %v139 = vrcp.pop %v137
        %v140 = vrcp.pop %v138
        %v141 = vmul.f32 %v137, %v139
        %v142 = vmul.f32 %v138, %v140
        %v143 = vsub.f32 2.0, %v141
        %v144 = vsub.f32 2.0, %v142
        %v145 = vmul.f32 %v139, %v143
        %v146 = vmul.f32 %v140, %v144
        %v147 = vmul.f32 %v145, 1.0614054
        %v148 = vmul.f32 %v146, 1.0614054
        %v149 = vadd.f32 %v147, -1.4531521
        %v150 = vadd.f32 %v148, -1.4531521
        %v151 = vmul.f32 %v149, %v145
        %v152 = vmul.f32 %v150, %v146
        %v153 = vadd.f32 %v151, 1.4214138
        %v154 = vadd.f32 %v152, 1.4214138
        %v155 = vmul.f32 %v153, %v145
        %v156 = vmul.f32 %v154, %v146
        %v157 = vadd.f32 %v155, -0.28449672
        %v158 = vadd.f32 %v156, -0.28449672
        %v159 = vmul.f32 %v157, %v145
        %v160 = vmul.f32 %v158, %v146
        %v161 = vadd.f32 %v159, 0.2548296
        %v162 = vadd.f32 %v160, 0.2548296
        %v163 = vmul.f32 %v161, %v145
        %v164 = vmul.f32 %v162, %v146
        %v165 = vsub.f32 0.0, %v133
        %v166 = vsub.f32 0.0, %v134
        %v167 = vmul.f32 %v165, %v133
        %v168 = vmul.f32 %v166, %v134
        %v169 = vmul.f32 %v167, 1.442695
        %v170 = vpow.pop %v169
        %v171 = vmul.f32 %v168, 1.442695
        %v172 = vpow.pop %v171
        %v173 = vmul.f32 %v163, %v170
        %v174 = vmul.f32 %v164, %v172
        %v175 = vsub.f32 1.0, %v173
        %v176 = vsub.f32 1.0, %v174
        %v177 = vmul.f32 %v131, %v175
        %v178 = vmul.f32 %v132, %v176
        %v179 = vadd.f32 %v177, 1.0
        %v180 = vadd.f32 %v178, 1.0
        %v181 = vmul.f32 %v125, %v179
        %v182 = vmul.f32 %v126, %v180
        %vm183 = vcmask 523264
        %184 = vst.msk [vmem:[#allocation4] sm:$0xff] %vm183, %v181
        %185 = vst.msk [vmem:[#allocation4 + $0x8] sm:$0xff] %vm183, %v182
      $region29: #{tpu_custom_call.1} parent=16 // pred_fallthru
        _
    $region17: #{tpu_custom_call.1} parent=1 // pred_fallthru
      _
    %p186 = scmp.eq.s32.totalorder %s27, 1
    // Predicated region
    $region30: #{tpu_custom_call.1} parent=1 // pred_check
      %p187 = pneg %p186
    $region31: #{tpu_custom_call.1} parent=1 // pred_check_branch
      %189 = sbr.rel (%p187) target = $region33
    $region32: #{tpu_custom_call.1} parent=1 // pred_region
      %p190 = scmp.eq.s32.totalorder 0, 0
      // Predicated region
      $region34: #{tpu_custom_call.1} parent=32 // pred_check
        %p191 = pneg %p190
      $region35: #{tpu_custom_call.1} parent=32 // pred_check_branch
        %193 = sbr.rel (%p191) target = $region37
      $region36: #{tpu_custom_call.1} parent=32 // pred_region
        %vm194 = vcmask 523264
        %195 = vst.msk [vmem:[#allocation3] sm:$0xff] %vm194, %v87
        %196 = vst.msk [vmem:[#allocation3 + $0x8] sm:$0xff] %vm194, %v90
      $region37: #{tpu_custom_call.1} parent=32 // pred_fallthru
        _
      %p197 = scmp.ne.s32.totalorder 0, 0
      // Predicated region
      $region38: #{tpu_custom_call.1} parent=32 // pred_check
        %p198 = pneg %p197
      $region39: #{tpu_custom_call.1} parent=32 // pred_check_branch
        %200 = sbr.rel (%p198) target = $region41
      $region40: #{tpu_custom_call.1} parent=32 // pred_region
        %v201 = vld [vmem:[#allocation3] sm:$0xff]
        %v202 = vld [vmem:[#allocation3 + $0x8] sm:$0xff]
        %v203 = vadd.f32 %v201, %v87
        %v204 = vadd.f32 %v202, %v90
        %vm205 = vcmask 523264
        %206 = vst.msk [vmem:[#allocation3] sm:$0xff] %vm205, %v203
        %207 = vst.msk [vmem:[#allocation3 + $0x8] sm:$0xff] %vm205, %v204
      $region41: #{tpu_custom_call.1} parent=32 // pred_fallthru
        _
      // Predicated region
      $region42: #{tpu_custom_call.1} parent=32 // pred_check
        %p208 = pneg %p190
      $region43: #{tpu_custom_call.1} parent=32 // pred_check_branch
        %210 = sbr.rel (%p208) target = $region45
      $region44: #{tpu_custom_call.1} parent=32 // pred_region
        %v211 = vld [vmem:[#allocation3] sm:$0xff]
        %v212 = vld [vmem:[#allocation3 + $0x8] sm:$0xff]
        %v213 = vld [vmem:[%s2] sm:$0x1]
        %v215 = vperm.slane %v213, 0
        %v217 = vadd.f32 %v211, %v215
        %v218 = vadd.f32 %v212, %v215
        %v219 = vmul.f32 %v217, 0.5
        %v220 = vmul.f32 %v218, 0.5
        %v221 = vmul.f32 %v217, 0.70710677
        %v222 = vmul.f32 %v218, 0.70710677
        %vm223 = vcmp.ge.f32.partialorder %v221, 0.0
        %vm224 = vcmp.ge.f32.partialorder %v222, 0.0
        %v225 = vsel %vm223, 1.0, -1.0
        %v226 = vsel %vm224, 1.0, -1.0
        %v227 = vand.u32 2147483647, %v221
        %v228 = vand.u32 2147483647, %v222
        %v229 = vmul.f32 %v227, 0.3275911
        %v230 = vmul.f32 %v228, 0.3275911
        %v231 = vadd.f32 %v229, 1.0
        %v232 = vadd.f32 %v230, 1.0
        %v233 = vrcp.pop %v231
        %v234 = vrcp.pop %v232
        %v235 = vmul.f32 %v231, %v233
        %v236 = vmul.f32 %v232, %v234
        %v237 = vsub.f32 2.0, %v235
        %v238 = vsub.f32 2.0, %v236
        %v239 = vmul.f32 %v233, %v237
        %v240 = vmul.f32 %v234, %v238
        %v241 = vmul.f32 %v239, 1.0614054
        %v242 = vmul.f32 %v240, 1.0614054
        %v243 = vadd.f32 %v241, -1.4531521
        %v244 = vadd.f32 %v242, -1.4531521
        %v245 = vmul.f32 %v243, %v239
        %v246 = vmul.f32 %v244, %v240
        %v247 = vadd.f32 %v245, 1.4214138
        %v248 = vadd.f32 %v246, 1.4214138
        %v249 = vmul.f32 %v247, %v239
        %v250 = vmul.f32 %v248, %v240
        %v251 = vadd.f32 %v249, -0.28449672
        %v252 = vadd.f32 %v250, -0.28449672
        %v253 = vmul.f32 %v251, %v239
        %v254 = vmul.f32 %v252, %v240
        %v255 = vadd.f32 %v253, 0.2548296
        %v256 = vadd.f32 %v254, 0.2548296
        %v257 = vmul.f32 %v255, %v239
        %v258 = vmul.f32 %v256, %v240
        %v259 = vsub.f32 0.0, %v227
        %v260 = vsub.f32 0.0, %v228
        %v261 = vmul.f32 %v259, %v227
        %v262 = vmul.f32 %v260, %v228
        %v263 = vmul.f32 %v261, 1.442695
        %v264 = vpow.pop %v263
        %v265 = vmul.f32 %v262, 1.442695
        %v266 = vpow.pop %v265
        %v267 = vmul.f32 %v257, %v264
        %v268 = vmul.f32 %v258, %v266
        %v269 = vsub.f32 1.0, %v267
        %v270 = vsub.f32 1.0, %v268
        %v271 = vmul.f32 %v225, %v269
        %v272 = vmul.f32 %v226, %v270
        %v273 = vadd.f32 %v271, 1.0
        %v274 = vadd.f32 %v272, 1.0
        %v275 = vmul.f32 %v219, %v273
        %v276 = vmul.f32 %v220, %v274
        %vm277 = vcmask 523264
        %278 = vst.msk [vmem:[#allocation4] sm:$0xff] %vm277, %v275
        %279 = vst.msk [vmem:[#allocation4 + $0x8] sm:$0xff] %vm277, %v276
      $region45: #{tpu_custom_call.1} parent=32 // pred_fallthru
        _
    $region33: #{tpu_custom_call.1} parent=1 // pred_fallthru
      _
    // Predicated region
    $region46: #{tpu_custom_call.1} parent=1 // pred_check
      _
    $region47: #{tpu_custom_call.1} parent=1 // pred_check_branch
      %281 = sbr.rel (0) target = $region49
    $region48: #{tpu_custom_call.1} parent=1 // pred_region
      %283 = vsyncadd [#allocation5], 0
      %s284 = sshll.u32 [#allocation4], 4
      %s285 = int_to_ptr.vmem [resolvable:$true] %s284
      %s286 = sshll.u32 %s3, 4
      %s287 = int_to_ptr.hbm [resolvable:$true] %s286
      %292 = dma.vmem_to_hbm [thread:$0]  %s285, 256, %s287, [#allocation5], 128, 128, 8
    $region49: #{tpu_custom_call.1} parent=1 // pred_fallthru
      _
    // Predicated region
    $region50: #{tpu_custom_call.1} parent=1 // pred_check
      _
    $region51: #{tpu_custom_call.1} parent=1 // pred_check_branch
      %294 = sbr.rel (0) target = $region53
    $region52: #{tpu_custom_call.1} parent=1 // pred_region
      %296 = dma.done [#allocation5], 256
    $region53: #{tpu_custom_call.1} parent=1 // pred_fallthru
      _
    %297 = vsyncpa [#allocation5], 1

</llo_original>
